<compile_context>
chip_gen: v5e
topology: v5e:2x2
jax: 0.10.0
libtpu: 0.0.40
codegen_flags: <defaults>
</compile_context>

<pallas_src>
import functools
import math

import jax
import jax.numpy as jnp
from jax import lax
from jax.experimental import pallas as pl
from jax.experimental.pallas import tpu as pltpu


def _round_up(x, m):
    return ((x + m - 1) // m) * m


def traj_embedding_kernel(idx_ref, hi_ref, lo_ref, out_ref, *, V_pad):
    # idx_ref: (tm, G) int32 raw token ids in [0, vocab)
    # hi_ref/lo_ref: (K, OC) bf16 block-diagonal table, pre-scaled by
    #                sqrt(d_model); hi + lo reconstructs the f32 table.
    # out_ref: (tm, OC) lane-dense packed output rows (OC multiple of 128)
    tm, G = idx_ref.shape
    K = hi_ref.shape[0]

    idx = idx_ref[...]                                       # (tm, G) int32
    col = lax.broadcasted_iota(jnp.int32, (tm, K), 1)        # (tm, K) int32

    # One-hot over the K contraction dim.  Group g occupies table rows
    # [g*V_pad, g*V_pad + vocab), so compare against a constant-shifted iota;
    # the group column ranges are disjoint -> OR of comparisons is exact.
    hit = idx[:, 0:1] == col
    for g in range(1, G):
        hit = hit | (idx[:, g:g + 1] == (col - g * V_pad))
    onehot = hit.astype(jnp.bfloat16)                        # exact 0/1 in bf16

    acc = jnp.dot(onehot, hi_ref[...], preferred_element_type=jnp.float32)
    acc = acc + jnp.dot(onehot, lo_ref[...], preferred_element_type=jnp.float32)
    out_ref[...] = acc.astype(out_ref.dtype)


def traj_embedding(x, weight, d_model=None, *, tile_m=2048,
                   out_dtype=jnp.float32):
    """x: int indices of any shape. weight: (vocab, d_model) embedding table
    (row 0 is the padding row). Returns x.shape + (d_model,) in out_dtype,
    equal to embedding(x) * sqrt(d_model)."""
    if d_model is None:
        d_model = weight.shape[1]
    vocab = weight.shape[0]
    assert weight.shape[1] == d_model

    lead_shape = x.shape
    N = int(x.size)
    if N == 0:                                   # empty-input guard
        return jnp.zeros(lead_shape + (d_model,), out_dtype)

    # Row-packing factor: pack G logical rows per 128-lane output row when
    # d_model divides 128; otherwise G = 1 with zero-padded output columns
    # (still lane-dense, padding sliced off below).
    if d_model < 128 and 128 % d_model == 0 and d_model >= vocab:
        G = 128 // d_model
        V_pad = d_model              # per-group row stride in the table
        K = 128                      # lane-native contraction dim
    else:
        G = 1
        K = _round_up(vocab, 128)
        V_pad = K
    out_cols = G * d_model
    out_cols_pad = _round_up(out_cols, 128)

    # Block-diagonal, pre-scaled table (tiny), split into bf16 hi + lo so the
    # MXU runs in bf16 while preserving ~f32 table precision.
    scale = math.sqrt(d_model)
    w = weight.astype(jnp.float32) * scale                    # (vocab, d)
    w = jnp.pad(w, ((0, V_pad - vocab), (0, 0)))              # (V_pad, d)
    if G > 1:
        eye = jnp.eye(G, dtype=jnp.float32)
        tab = jnp.einsum('gh,vd->gvhd', eye, w).reshape(G * V_pad, G * d_model)
    else:
        tab = w
    tab = jnp.pad(tab, ((0, K - tab.shape[0]),
                        (0, out_cols_pad - tab.shape[1])))
    tab_hi = tab.astype(jnp.bfloat16)
    tab_lo = (tab - tab_hi.astype(jnp.float32)).astype(jnp.bfloat16)

    # Grid / tile selection: big tiles (amortize per-step overhead), sublane-
    # aligned, and an even grid (>= 2 for non-trivial sizes) so v7x's two
    # TensorCores get a balanced "parallel" split.
    SUB = 16                                     # sublane alignment (bf16-safe)
    tile_m = _round_up(max(tile_m, SUB), SUB)
    M = -(-N // G)                               # packed rows needed
    grid = max(1, -(-M // tile_m))
    if M > SUB:
        grid = max(grid, 2)
    if grid > 1 and grid % 2 == 1:
        grid += 1
    tile = _round_up(-(-M // grid), SUB)
    M_pad = grid * tile

    # Raw indices, padded with 0 (sliced off after the kernel).
    idx = x.reshape(-1).astype(jnp.int32)
    idx = jnp.pad(idx, (0, M_pad * G - N)).reshape(M_pad, G)

    out_itemsize = jnp.dtype(out_dtype).itemsize
    cost = pl.CostEstimate(
        flops=4 * M_pad * K * out_cols_pad,            # two bf16 matmuls
        transcendentals=0,
        bytes_accessed=(4 * M_pad * G                  # indices
                        + 2 * 2 * K * out_cols_pad     # hi + lo tables (bf16)
                        + M_pad * out_cols_pad * out_itemsize))

    kernel = functools.partial(traj_embedding_kernel, V_pad=V_pad)

    out = pl.pallas_call(
        kernel,
        out_shape=jax.ShapeDtypeStruct((M_pad, out_cols_pad), out_dtype),
        grid_spec=pltpu.PrefetchScalarGridSpec(
            num_scalar_prefetch=0,
            grid=(grid,),
            in_specs=[
                pl.BlockSpec((tile, G), lambda i: (i, 0)),
                pl.BlockSpec((K, out_cols_pad), lambda i: (0, 0)),
                pl.BlockSpec((K, out_cols_pad), lambda i: (0, 0)),
            ],
            out_specs=pl.BlockSpec((tile, out_cols_pad), lambda i: (i, 0)),
        ),
        compiler_params=pltpu.CompilerParams(
            dimension_semantics=("parallel",)),
        cost_estimate=cost,
    )(idx, tab_hi, tab_lo)

    if out_cols_pad == G * d_model:
        out = out.reshape(M_pad * G, d_model)[:N]
    else:                                        # G == 1 with padded columns
        out = out[:N, :d_model]
    return out.reshape(lead_shape + (d_model,))


def _reference(x, weight, d_model):
    return jnp.take(weight, x, axis=0) * math.sqrt(d_model)


if __name__ == "__main__":
    # Small, deterministic example consistent with the module.
    d_model = 32
    vocab = 3
    B, S = 2, 8

    key = jax.random.PRNGKey(0)
    k_w, k_x, k_x2 = jax.random.split(key, 3)

    # nn.Embedding(3, d_model, padding_idx=0): row 0 is zeros.
    weight = jax.random.normal(k_w, (vocab, d_model), jnp.float32)
    weight = weight.at[0].set(0.0)

    x = jax.random.randint(k_x, (B, S), 0, vocab, dtype=jnp.int32)

    fn = jax.jit(traj_embedding,
                 static_argnames=("d_model", "tile_m", "out_dtype"))

    out = jax.block_until_ready(fn(x, weight, d_model=d_model))
    ref = _reference(x, weight, d_model)
    assert out.shape == (B, S, d_model)
    assert out.dtype == jnp.float32
    assert jnp.allclose(out, ref, atol=1e-4, rtol=1e-5)

    # Larger shape exercising grid > 1 (even split) and tail padding.
    x2 = jax.random.randint(k_x2, (4, 3000), 0, vocab, dtype=jnp.int32)
    out2 = jax.block_until_ready(fn(x2, weight, d_model=d_model))
    ref2 = _reference(x2, weight, d_model)
    assert jnp.allclose(out2, ref2, atol=1e-4, rtol=1e-5)

    # Optional bf16-output path (halves HBM write traffic) — looser tolerance.
    out3 = jax.block_until_ready(
        fn(x, weight, d_model=d_model, out_dtype=jnp.bfloat16))
    assert out3.dtype == jnp.bfloat16
    assert jnp.allclose(out3.astype(jnp.float32), ref, atol=5e-2, rtol=2e-2)

    print("KERNEL_OK")
</pallas_src>

<mosaic_0001>
module attributes {stable_mosaic.version = 11 : i64} {
  func.func @traj_embedding_kernel(%arg0: i32, %arg1: memref<16x4xi32, #tpu.memory_space<vmem>>, %arg2: memref<128x128xbf16, #tpu.memory_space<vmem>>, %arg3: memref<128x128xbf16, #tpu.memory_space<vmem>>, %arg4: memref<16x128xf32, #tpu.memory_space<vmem>>) attributes {dimension_semantics = [#tpu.dimension_semantics<parallel>], iteration_bounds = array<i64: 1>, scalar_prefetch = 0 : i64, scratch_operands = 0 : i64, tpu.core_type = #tpu.core_type<tc>, window_params = [{transform_indices = @transform_0, window_bounds = array<i64: 16, 4>}, {pipeline_mode = #tpu.pipeline_mode<synchronous>, transform_indices = @transform_1, window_bounds = array<i64: 128, 128>}, {pipeline_mode = #tpu.pipeline_mode<synchronous>, transform_indices = @transform_2, window_bounds = array<i64: 128, 128>}, {transform_indices = @transform_3, window_bounds = array<i64: 16, 128>}]} {
    %c0 = arith.constant 0 : index
    %c0_0 = arith.constant 0 : index
    %0 = vector.load %arg1[%c0, %c0_0] : memref<16x4xi32, #tpu.memory_space<vmem>>, vector<16x4xi32>
    %1 = tpu.iota {dimensions = array<i32: 1>} : vector<16x128xi32>
    %2 = vector.extract_strided_slice %0 {offsets = [0, 0], sizes = [16, 1], strides = [1, 1]} : vector<16x4xi32> to vector<16x1xi32>
    %3 = vector.broadcast %2 : vector<16x1xi32> to vector<16x128xi32>
    %4 = arith.cmpi eq, %3, %1 : vector<16x128xi32>
    %5 = vector.extract_strided_slice %0 {offsets = [0, 1], sizes = [16, 1], strides = [1, 1]} : vector<16x4xi32> to vector<16x1xi32>
    %c32_i32 = arith.constant 32 : i32
    %6 = vector.broadcast %c32_i32 : i32 to vector<16x128xi32>
    %7 = arith.subi %1, %6 : vector<16x128xi32>
    %8 = vector.broadcast %5 : vector<16x1xi32> to vector<16x128xi32>
    %9 = arith.cmpi eq, %8, %7 : vector<16x128xi32>
    %10 = arith.ori %4, %9 : vector<16x128xi1>
    %11 = vector.extract_strided_slice %0 {offsets = [0, 2], sizes = [16, 1], strides = [1, 1]} : vector<16x4xi32> to vector<16x1xi32>
    %c64_i32 = arith.constant 64 : i32
    %12 = vector.broadcast %c64_i32 : i32 to vector<16x128xi32>
    %13 = arith.subi %1, %12 : vector<16x128xi32>
    %14 = vector.broadcast %11 : vector<16x1xi32> to vector<16x128xi32>
    %15 = arith.cmpi eq, %14, %13 : vector<16x128xi32>
    %16 = arith.ori %10, %15 : vector<16x128xi1>
    %17 = vector.extract_strided_slice %0 {offsets = [0, 3], sizes = [16, 1], strides = [1, 1]} : vector<16x4xi32> to vector<16x1xi32>
    %c96_i32 = arith.constant 96 : i32
    %18 = vector.broadcast %c96_i32 : i32 to vector<16x128xi32>
    %19 = arith.subi %1, %18 : vector<16x128xi32>
    %20 = vector.broadcast %17 : vector<16x1xi32> to vector<16x128xi32>
    %21 = arith.cmpi eq, %20, %19 : vector<16x128xi32>
    %22 = arith.ori %16, %21 : vector<16x128xi1>
    %23 = arith.extui %22 : vector<16x128xi1> to vector<16x128xi32>
    %24 = arith.sitofp %23 : vector<16x128xi32> to vector<16x128xf32>
    %25 = arith.truncf %24 : vector<16x128xf32> to vector<16x128xbf16>
    %c0_1 = arith.constant 0 : index
    %c0_2 = arith.constant 0 : index
    %26 = vector.load %arg2[%c0_1, %c0_2] : memref<128x128xbf16, #tpu.memory_space<vmem>>, vector<128x128xbf16>
    %cst = arith.constant dense<0.000000e+00> : vector<16x128xf32>
    %27 = tpu.matmul %25, %26, %cst {dimension_numbers = #tpu.dot_dimension_numbers<[1], [0], [0], [1], [0, 0, 1, 1], [], []>} : vector<16x128xbf16>, vector<128x128xbf16>, vector<16x128xf32> -> vector<16x128xf32>
    %c0_3 = arith.constant 0 : index
    %c0_4 = arith.constant 0 : index
    %28 = vector.load %arg3[%c0_3, %c0_4] : memref<128x128xbf16, #tpu.memory_space<vmem>>, vector<128x128xbf16>
    %cst_5 = arith.constant dense<0.000000e+00> : vector<16x128xf32>
    %29 = tpu.matmul %25, %28, %cst_5 {dimension_numbers = #tpu.dot_dimension_numbers<[1], [0], [0], [1], [0, 0, 1, 1], [], []>} : vector<16x128xbf16>, vector<128x128xbf16>, vector<16x128xf32> -> vector<16x128xf32>
    %30 = arith.addf %27, %29 : vector<16x128xf32>
    %c0_6 = arith.constant 0 : index
    %c0_7 = arith.constant 0 : index
    %31 = vector.load %arg4[%c0_6, %c0_7] : memref<16x128xf32, #tpu.memory_space<vmem>>, vector<16x128xf32>
    tpu.vector_store %arg4[%c0_6, %c0_7], %30 {strides = array<i32>} : memref<16x128xf32, #tpu.memory_space<vmem>>, vector<16x128xf32>,
    return
  }
  func.func @transform_0(%arg0: i32) -> (i32, i32) {
    %c0_i32 = arith.constant 0 : i32
    %c0_i32_0 = arith.constant 0 : i32
    return %arg0, %c0_i32 : i32, i32
  }
  func.func @transform_1(%arg0: i32) -> (i32, i32) {
    %c0_i32 = arith.constant 0 : i32
    %c0_i32_0 = arith.constant 0 : i32
    %c0_i32_1 = arith.constant 0 : i32
    return %c0_i32, %c0_i32_0 : i32, i32
  }
  func.func @transform_2(%arg0: i32) -> (i32, i32) {
    %c0_i32 = arith.constant 0 : i32
    %c0_i32_0 = arith.constant 0 : i32
    %c0_i32_1 = arith.constant 0 : i32
    return %c0_i32, %c0_i32_0 : i32, i32
  }
  func.func @transform_3(%arg0: i32) -> (i32, i32) {
    %c0_i32 = arith.constant 0 : i32
    %c0_i32_0 = arith.constant 0 : i32
    return %arg0, %c0_i32 : i32, i32
  }
}

</mosaic_0001>

<llo_original>
// kernel: traj_embedding.1
$region0: #{traj_embedding.1}
  #allocation0 [shape = 'u32[]', space=smem, size = 0x4, offset = 0x4, fixed_abs, tag = 'smem constant byte address 0x4 - core index']
  #allocation1 [shape = 'u32[72,128]{1,0:T(1,128)}', space=vmem, size = 0x9000, scoped, tag = 'internal scratch']
  %s0 = inlined_call_operand.vmem [shape: s32[16,4], index: 0, kind: input, shape index: {}]
  %s1 = inlined_call_operand.vmem [shape: bf16[128,128], index: 1, kind: input, shape index: {}]
  %s2 = inlined_call_operand.vmem [shape: bf16[128,128], index: 2, kind: input, shape index: {}]
  %s3 = inlined_call_operand.vmem [shape: f32[16,128], index: 3, kind: output, shape index: {}]
  %s4 = sld [smem:[#allocation0]]
  $region22: #{traj_embedding.1} parent=0
    _
  %s6 = ssub.s32 1, %s4
  %s7 = scalar_select 0, %s6, %s4
  // Predicated region
  $region2: #{traj_embedding.1} parent=0 // pred_check
    _
  $region3: #{traj_embedding.1} parent=0 // pred_check_branch
    %9 = sbr.rel (0) target = $region5
  $region4: #{traj_embedding.1} parent=0 // pred_region
    _
  $region5: #{traj_embedding.1} parent=0 // pred_fallthru
    _
  // Predicated region
  $region6: #{traj_embedding.1} parent=0 // pred_check
    _
  $region7: #{traj_embedding.1} parent=0 // pred_check_branch
    %11 = sbr.rel (0) target = $region9
  $region8: #{traj_embedding.1} parent=0 // pred_region
    _
  $region9: #{traj_embedding.1} parent=0 // pred_fallthru
    _
  // Predicated region
  $region10: #{traj_embedding.1} parent=0 // pred_check
    _
  $region11: #{traj_embedding.1} parent=0 // pred_check_branch
    %13 = sbr.rel (0) target = $region13
  $region12: #{traj_embedding.1} parent=0 // pred_region
    _
  $region13: #{traj_embedding.1} parent=0 // pred_fallthru
    _
  %v14 = vld [vmem:[%s0] sm:$0xff]
  %v15 = vld [vmem:[%s0 + $0x8] sm:$0xff]
  %v16 = vlaneseq
  %v17 = vand.u32 %v16, 127
  %18 = vset.pattern.permute.xlu0 0
  %19 = vperm.xlu0 %18, %v14
  %v20 = vpop.permute.xlu0 %19
  %21 = vset.pattern.permute.xlu0 0
  %22 = vperm.xlu0 %21, %v15
  %v23 = vpop.permute.xlu0 %22
  %vm24 = vcmp.eq.s32.totalorder %v20, %v17
  %vm25 = vcmp.eq.s32.totalorder %v23, %v17
  %v26 = vsub.s32 %v17, 32
  %27 = vset.pattern.permute.xlu0 1
  %28 = vperm.xlu0 %27, %v14
  %v29 = vpop.permute.xlu0 %28
  %30 = vset.pattern.permute.xlu0 1
  %31 = vperm.xlu0 %30, %v15
  %v32 = vpop.permute.xlu0 %31
  %vm33 = vcmp.eq.s32.totalorder %v29, %v26
  %vm34 = vcmp.eq.s32.totalorder %v32, %v26
  %vm35 = vmor %vm24, %vm33
  %vm36 = vmor %vm25, %vm34
  %v37 = vsub.s32 %v17, 64
  %38 = vset.pattern.permute.xlu0 2
  %39 = vperm.xlu0 %38, %v14
  %v40 = vpop.permute.xlu0 %39
  %41 = vset.pattern.permute.xlu0 2
  %42 = vperm.xlu0 %41, %v15
  %v43 = vpop.permute.xlu0 %42
  %vm44 = vcmp.eq.s32.totalorder %v40, %v37
  %vm45 = vcmp.eq.s32.totalorder %v43, %v37
  %vm46 = vmor %vm35, %vm44
  %vm47 = vmor %vm36, %vm45
  %v48 = vsub.s32 %v17, 96
  %49 = vset.pattern.permute.xlu0 3
  %50 = vperm.xlu0 %49, %v14
  %v51 = vpop.permute.xlu0 %50
  %52 = vset.pattern.permute.xlu0 3
  %53 = vperm.xlu0 %52, %v15
  %v54 = vpop.permute.xlu0 %53
  %vm55 = vcmp.eq.s32.totalorder %v51, %v48
  %vm56 = vcmp.eq.s32.totalorder %v54, %v48
  %vm57 = vmor %vm46, %vm55
  %vm58 = vmor %vm47, %vm56
  %v59 = vsel %vm57, 1, 0
  %v60 = vsel %vm58, 1, 0
  %v61 = vcvt.s32.f32 %v59
  %v62 = vcvt.s32.f32 %v60
  %v63 = vpack.c.bf16 %v62, %v61
  %v64 = vld [vmem:[%s1] sm:$0xf]
  %v65 = vld [vmem:[%s1 + $0x4] sm:$0xf]
  %v66 = vld [vmem:[%s1 + $0x8] sm:$0xf]
  %v67 = vld [vmem:[%s1 + $0xc] sm:$0xf]
  %v68 = vld [vmem:[%s1 + $0x10] sm:$0xf]
  %v69 = vld [vmem:[%s1 + $0x14] sm:$0xf]
  %v70 = vld [vmem:[%s1 + $0x18] sm:$0xf]
  %v71 = vld [vmem:[%s1 + $0x1c] sm:$0xf]
  %v72 = vld [vmem:[%s1 + $0x20] sm:$0xf]
  %v73 = vld [vmem:[%s1 + $0x24] sm:$0xf]
  %v74 = vld [vmem:[%s1 + $0x28] sm:$0xf]
  %v75 = vld [vmem:[%s1 + $0x2c] sm:$0xf]
  %v76 = vld [vmem:[%s1 + $0x30] sm:$0xf]
  %v77 = vld [vmem:[%s1 + $0x34] sm:$0xf]
  %v78 = vld [vmem:[%s1 + $0x38] sm:$0xf]
  %v79 = vld [vmem:[%s1 + $0x3c] sm:$0xf]
  %v80 = vld [vmem:[%s2] sm:$0xf]
  %v81 = vld [vmem:[%s2 + $0x4] sm:$0xf]
  %v82 = vld [vmem:[%s2 + $0x8] sm:$0xf]
  %v83 = vld [vmem:[%s2 + $0xc] sm:$0xf]
  %v84 = vld [vmem:[%s2 + $0x10] sm:$0xf]
  %v85 = vld [vmem:[%s2 + $0x14] sm:$0xf]
  %v86 = vld [vmem:[%s2 + $0x18] sm:$0xf]
  %v87 = vld [vmem:[%s2 + $0x1c] sm:$0xf]
  %v88 = vld [vmem:[%s2 + $0x20] sm:$0xf]
  %v89 = vld [vmem:[%s2 + $0x24] sm:$0xf]
  %v90 = vld [vmem:[%s2 + $0x28] sm:$0xf]
  %v91 = vld [vmem:[%s2 + $0x2c] sm:$0xf]
  %v92 = vld [vmem:[%s2 + $0x30] sm:$0xf]
  %v93 = vld [vmem:[%s2 + $0x34] sm:$0xf]
  %v94 = vld [vmem:[%s2 + $0x38] sm:$0xf]
  %v95 = vld [vmem:[%s2 + $0x3c] sm:$0xf]
  %v112 = vunpack.c.l.b16 %v80
  %v113 = vunpack.c.l.b16 %v81
  %v114 = vunpack.c.l.b16 %v82
  %v115 = vunpack.c.l.b16 %v83
  %v116 = vunpack.c.l.b16 %v84
  %v117 = vunpack.c.l.b16 %v85
  %v118 = vunpack.c.l.b16 %v86
  %v119 = vunpack.c.l.b16 %v87
  %v120 = vunpack.c.l.b16 %v88
  %v121 = vunpack.c.l.b16 %v89
  %v122 = vunpack.c.l.b16 %v90
  %v123 = vunpack.c.l.b16 %v91
  %v124 = vunpack.c.l.b16 %v92
  %v125 = vunpack.c.l.b16 %v93
  %v126 = vunpack.c.l.b16 %v94
  %v127 = vunpack.c.l.b16 %v95
  %v128 = vpack.c.b16 %v113, %v112
  %v129 = vpack.c.b16 %v115, %v114
  %v130 = vpack.c.b16 %v117, %v116
  %v131 = vpack.c.b16 %v119, %v118
  %v132 = vpack.c.b16 %v121, %v120
  %v133 = vpack.c.b16 %v123, %v122
  %v134 = vpack.c.b16 %v125, %v124
  %v135 = vpack.c.b16 %v127, %v126
  %144 = vmatpush.bf16.msra.mxu0 %v135
  %145 = vmatpush.bf16.msra.mxu0 %v134
  %146 = vmatpush.bf16.msra.mxu0 %v133
  %147 = vmatpush.bf16.msra.mxu0 %v132
  %148 = vmatpush.bf16.msra.mxu0 %v131
  %149 = vmatpush.bf16.msra.mxu0 %v130
  %150 = vmatpush.bf16.msra.mxu0 %v129
  %151 = vmatpush.bf16.msra.mxu0 %v128
  %152 = vmatmul.bf16.gmra.mxu0 %v63
  %v153 = vpop.f32.mrf.mxu0
  %v154 = vadd.f32 0.0, %v153
  %v155 = vpop.f32.mrf.mxu0
  %v156 = vadd.f32 0.0, %v155
  %157 = vdwg.mxu0
  %v174 = vunpack.c.l.b16 %v64
  %v175 = vunpack.c.l.b16 %v65
  %v176 = vunpack.c.l.b16 %v66
  %v177 = vunpack.c.l.b16 %v67
  %v178 = vunpack.c.l.b16 %v68
  %v179 = vunpack.c.l.b16 %v69
  %v180 = vunpack.c.l.b16 %v70
  %v181 = vunpack.c.l.b16 %v71
  %v182 = vunpack.c.l.b16 %v72
  %v183 = vunpack.c.l.b16 %v73
  %v184 = vunpack.c.l.b16 %v74
  %v185 = vunpack.c.l.b16 %v75
  %v186 = vunpack.c.l.b16 %v76
  %v187 = vunpack.c.l.b16 %v77
  %v188 = vunpack.c.l.b16 %v78
  %v189 = vunpack.c.l.b16 %v79
  %v190 = vpack.c.b16 %v175, %v174
  %v191 = vpack.c.b16 %v177, %v176
  %v192 = vpack.c.b16 %v179, %v178
  %v193 = vpack.c.b16 %v181, %v180
  %v194 = vpack.c.b16 %v183, %v182
  %v195 = vpack.c.b16 %v185, %v184
  %v196 = vpack.c.b16 %v187, %v186
  %v197 = vpack.c.b16 %v189, %v188
  %206 = vmatpush.bf16.msra.mxu0 %v197
  %207 = vmatpush.bf16.msra.mxu0 %v196
  %208 = vmatpush.bf16.msra.mxu0 %v195
  %209 = vmatpush.bf16.msra.mxu0 %v194
  %210 = vmatpush.bf16.msra.mxu0 %v193
  %211 = vmatpush.bf16.msra.mxu0 %v192
  %212 = vmatpush.bf16.msra.mxu0 %v191
  %213 = vmatpush.bf16.msra.mxu0 %v190
  %214 = vmatmul.bf16.gmra.mxu0 %v63
  %v215 = vpop.f32.mrf.mxu0
  %v216 = vadd.f32 %v154, %v215
  %v217 = vpop.f32.mrf.mxu0
  %v218 = vadd.f32 %v156, %v217
  %219 = vdwg.mxu0
  %220 = vst [vmem:[%s3] sm:$0xff] %v216
  %221 = vst [vmem:[%s3 + $0x8] sm:$0xff] %v218
  // Predicated region
  $region14: #{traj_embedding.1} parent=0 // pred_check
    _
  $region15: #{traj_embedding.1} parent=0 // pred_check_branch
    %223 = sbr.rel (0) target = $region17
  $region16: #{traj_embedding.1} parent=0 // pred_region
    _
  $region17: #{traj_embedding.1} parent=0 // pred_fallthru
    _
  // Predicated region
  $region18: #{traj_embedding.1} parent=0 // pred_check
    _
  $region19: #{traj_embedding.1} parent=0 // pred_check_branch
    %225 = sbr.rel (0) target = $region21
  $region20: #{traj_embedding.1} parent=0 // pred_region
    _
  $region21: #{traj_embedding.1} parent=0 // pred_fallthru
    _

</llo_original>
